<compile_context>
chip_gen: v5e
topology: v5e:2x2
jax: 0.10.0
libtpu: 0.0.40
codegen_flags: <defaults>
</compile_context>

<pallas_src>
import functools

import jax
import jax.numpy as jnp
from jax.experimental import pallas as pl
from jax.experimental.pallas import tpu as pltpu


def _linf_linear_kernel(x_ref, wt_ref, s_ref, b_ref, o_ref):
    # x_ref: (tile_m, K), wt_ref: (K, N), s_ref/b_ref: (1, N), o_ref: (tile_m, N)
    acc = jnp.dot(x_ref[...], wt_ref[...],
                  preferred_element_type=jnp.float32)      # MXU, f32 accumulate
    out = acc * s_ref[...] + b_ref[...]                    # epilogue: scale + bias
    o_ref[...] = out.astype(o_ref.dtype)


def _round_up(a, b):
    return (a + b - 1) // b * b


@functools.partial(jax.jit, static_argnames=("tile_m",))
def linf_linear(x, weight, bias, *, tile_m=256):
    """x: (..., in_features), weight: (out, in), bias: (out,)."""
    out_features, in_features = weight.shape
    lead_shape = x.shape[:-1]
    x2d = x.reshape(-1, in_features)
    m = x2d.shape[0]

    # Per-output-row L_inf scale, computed once in f32 (matches reference tol).
    absrowsum = jnp.sum(jnp.abs(weight.astype(jnp.float32)), axis=1)   # (N,)
    scale = jnp.minimum(1.0 / absrowsum, 1.0)                          # (N,)

    # Lane-dense RHS for the MXU: (K, N). Parameter transpose is amortized.
    w_t = weight.T

    # Pad N to a multiple of 128 (lane-dense output), M to a tile multiple.
    n_pad = _round_up(max(out_features, 128), 128)
    tm = min(tile_m, _round_up(m, 8))
    m_pad = _round_up(m, tm)

    if m_pad != m:
        x2d = jnp.pad(x2d, ((0, m_pad - m), (0, 0)))
    if n_pad != out_features:
        w_t = jnp.pad(w_t, ((0, 0), (0, n_pad - out_features)))
        scale = jnp.pad(scale, (0, n_pad - out_features))
        bias_p = jnp.pad(bias, (0, n_pad - out_features))
    else:
        bias_p = bias

    scale2d = scale.reshape(1, n_pad).astype(jnp.float32)
    bias2d = bias_p.reshape(1, n_pad).astype(jnp.float32)

    grid = (m_pad // tm,)
    out = pl.pallas_call(
        _linf_linear_kernel,
        out_shape=jax.ShapeDtypeStruct((m_pad, n_pad), x.dtype),
        grid_spec=pltpu.PrefetchScalarGridSpec(
            num_scalar_prefetch=0,
            grid=grid,
            in_specs=[
                # x row-tiles stream over the grid (double-buffered).
                pl.BlockSpec((tm, in_features), lambda i: (i, 0)),
                # weight / scale / bias stay resident across all row tiles.
                pl.BlockSpec((in_features, n_pad), lambda i: (0, 0)),
                pl.BlockSpec((1, n_pad), lambda i: (0, 0)),
                pl.BlockSpec((1, n_pad), lambda i: (0, 0)),
            ],
            out_specs=pl.BlockSpec((tm, n_pad), lambda i: (i, 0)),
        ),
        compiler_params=pltpu.CompilerParams(
            dimension_semantics=("parallel",),      # megacore-shard row tiles on v7x
            vmem_limit_bytes=32 * 1024 * 1024,      # safe on v5e/v6e/v7x for these tiles
        ),
    )(x2d, w_t, scale2d, bias2d)

    out = out[:m, :out_features]
    return out.reshape(*lead_shape, out_features)


def _reference(x, weight, bias):
    absrowsum = jnp.sum(jnp.abs(weight), axis=1)
    scale = jnp.minimum(1.0 / absrowsum, 1.0)
    wn = weight * scale[:, None]
    return x @ wn.T + bias


if __name__ == "__main__":
    key = jax.random.PRNGKey(0)
    k_x, k_w, k_b = jax.random.split(key, 3)

    batch, seq, in_features, out_features = 2, 8, 32, 16

    # Deterministic "nn.Linear"-style init: U(-1/sqrt(in), 1/sqrt(in)).
    bound = 1.0 / jnp.sqrt(jnp.float32(in_features))
    weight = jax.random.uniform(
        k_w, (out_features, in_features), jnp.float32, -bound, bound)
    bias = jax.random.uniform(
        k_b, (out_features,), jnp.float32, -bound, bound)
    x = jax.random.normal(k_x, (batch, seq, in_features), jnp.float32)

    y = linf_linear(x, weight, bias)
    jax.block_until_ready(y)

    y_ref = _reference(x.reshape(-1, in_features), weight, bias).reshape(
        batch, seq, out_features)
    assert y.shape == (batch, seq, out_features)
    assert jnp.allclose(y, y_ref, atol=1e-5, rtol=1e-5)

    print("KERNEL_OK")
</pallas_src>

<mosaic_0001>
module attributes {stable_mosaic.version = 11 : i64} {
  func.func @_linf_linear_kernel(%arg0: i32, %arg1: memref<16x32xf32, #tpu.memory_space<vmem>>, %arg2: memref<32x128xf32, #tpu.memory_space<vmem>>, %arg3: memref<1x128xf32, #tpu.memory_space<vmem>>, %arg4: memref<1x128xf32, #tpu.memory_space<vmem>>, %arg5: memref<16x128xf32, #tpu.memory_space<vmem>>) attributes {dimension_semantics = [#tpu.dimension_semantics<parallel>], iteration_bounds = array<i64: 1>, scalar_prefetch = 0 : i64, scratch_operands = 0 : i64, tpu.core_type = #tpu.core_type<tc>, window_params = [{transform_indices = @transform_0, window_bounds = array<i64: 16, 32>}, {pipeline_mode = #tpu.pipeline_mode<synchronous>, transform_indices = @transform_1, window_bounds = array<i64: 32, 128>}, {pipeline_mode = #tpu.pipeline_mode<synchronous>, transform_indices = @transform_2, window_bounds = array<i64: 1, 128>}, {pipeline_mode = #tpu.pipeline_mode<synchronous>, transform_indices = @transform_3, window_bounds = array<i64: 1, 128>}, {transform_indices = @transform_4, window_bounds = array<i64: 16, 128>}]} {
    %c0 = arith.constant 0 : index
    %c0_0 = arith.constant 0 : index
    %0 = vector.load %arg1[%c0, %c0_0] : memref<16x32xf32, #tpu.memory_space<vmem>>, vector<16x32xf32>
    %c0_1 = arith.constant 0 : index
    %c0_2 = arith.constant 0 : index
    %1 = vector.load %arg2[%c0_1, %c0_2] : memref<32x128xf32, #tpu.memory_space<vmem>>, vector<32x128xf32>
    %cst = arith.constant dense<0.000000e+00> : vector<16x128xf32>
    %2 = tpu.matmul %0, %1, %cst {dimension_numbers = #tpu.dot_dimension_numbers<[1], [0], [0], [1], [0, 0, 1, 1], [], []>} : vector<16x32xf32>, vector<32x128xf32>, vector<16x128xf32> -> vector<16x128xf32>
    %c0_3 = arith.constant 0 : index
    %c0_4 = arith.constant 0 : index
    %3 = vector.load %arg3[%c0_3, %c0_4] : memref<1x128xf32, #tpu.memory_space<vmem>>, vector<1x128xf32>
    %4 = vector.broadcast %3 : vector<1x128xf32> to vector<16x128xf32>
    %5 = arith.mulf %2, %4 : vector<16x128xf32>
    %c0_5 = arith.constant 0 : index
    %c0_6 = arith.constant 0 : index
    %6 = vector.load %arg4[%c0_5, %c0_6] : memref<1x128xf32, #tpu.memory_space<vmem>>, vector<1x128xf32>
    %7 = vector.broadcast %6 : vector<1x128xf32> to vector<16x128xf32>
    %8 = arith.addf %5, %7 : vector<16x128xf32>
    %c0_7 = arith.constant 0 : index
    %c0_8 = arith.constant 0 : index
    %9 = vector.load %arg5[%c0_7, %c0_8] : memref<16x128xf32, #tpu.memory_space<vmem>>, vector<16x128xf32>
    tpu.vector_store %arg5[%c0_7, %c0_8], %8 {strides = array<i32>} : memref<16x128xf32, #tpu.memory_space<vmem>>, vector<16x128xf32>,
    return
  }
  func.func @transform_0(%arg0: i32) -> (i32, i32) {
    %c0_i32 = arith.constant 0 : i32
    %c0_i32_0 = arith.constant 0 : i32
    return %arg0, %c0_i32 : i32, i32
  }
  func.func @transform_1(%arg0: i32) -> (i32, i32) {
    %c0_i32 = arith.constant 0 : i32
    %c0_i32_0 = arith.constant 0 : i32
    %c0_i32_1 = arith.constant 0 : i32
    return %c0_i32, %c0_i32_0 : i32, i32
  }
  func.func @transform_2(%arg0: i32) -> (i32, i32) {
    %c0_i32 = arith.constant 0 : i32
    %c0_i32_0 = arith.constant 0 : i32
    %c0_i32_1 = arith.constant 0 : i32
    return %c0_i32, %c0_i32_0 : i32, i32
  }
  func.func @transform_3(%arg0: i32) -> (i32, i32) {
    %c0_i32 = arith.constant 0 : i32
    %c0_i32_0 = arith.constant 0 : i32
    %c0_i32_1 = arith.constant 0 : i32
    return %c0_i32, %c0_i32_0 : i32, i32
  }
  func.func @transform_4(%arg0: i32) -> (i32, i32) {
    %c0_i32 = arith.constant 0 : i32
    %c0_i32_0 = arith.constant 0 : i32
    return %arg0, %c0_i32 : i32, i32
  }
}

</mosaic_0001>

<llo_original>
// kernel: linf_linear.1
$region0: #{linf_linear.1}
  #allocation0 [shape = 'u32[]', space=smem, size = 0x4, offset = 0x4, fixed_abs, tag = 'smem constant byte address 0x4 - core index']
  #allocation1 [shape = 'u32[72,128]{1,0:T(1,128)}', space=vmem, size = 0x9000, scoped, tag = 'internal scratch']
  %s0 = inlined_call_operand.vmem [shape: f32[16,32], index: 0, kind: input, shape index: {}]
  %s1 = inlined_call_operand.vmem [shape: f32[32,128], index: 1, kind: input, shape index: {}]
  %s2 = inlined_call_operand.vmem [shape: f32[1,128], index: 2, kind: input, shape index: {}]
  %s3 = inlined_call_operand.vmem [shape: f32[1,128], index: 3, kind: input, shape index: {}]
  %s4 = inlined_call_operand.vmem [shape: f32[16,128], index: 4, kind: output, shape index: {}]
  %s5 = sld [smem:[#allocation0]]
  $region26: #{linf_linear.1} parent=0
    _
  %s7 = ssub.s32 1, %s5
  %s8 = scalar_select 0, %s7, %s5
  // Predicated region
  $region2: #{linf_linear.1} parent=0 // pred_check
    _
  $region3: #{linf_linear.1} parent=0 // pred_check_branch
    %10 = sbr.rel (0) target = $region5
  $region4: #{linf_linear.1} parent=0 // pred_region
    _
  $region5: #{linf_linear.1} parent=0 // pred_fallthru
    _
  // Predicated region
  $region6: #{linf_linear.1} parent=0 // pred_check
    _
  $region7: #{linf_linear.1} parent=0 // pred_check_branch
    %12 = sbr.rel (0) target = $region9
  $region8: #{linf_linear.1} parent=0 // pred_region
    _
  $region9: #{linf_linear.1} parent=0 // pred_fallthru
    _
  // Predicated region
  $region10: #{linf_linear.1} parent=0 // pred_check
    _
  $region11: #{linf_linear.1} parent=0 // pred_check_branch
    %14 = sbr.rel (0) target = $region13
  $region12: #{linf_linear.1} parent=0 // pred_region
    _
  $region13: #{linf_linear.1} parent=0 // pred_fallthru
    _
  // Predicated region
  $region14: #{linf_linear.1} parent=0 // pred_check
    _
  $region15: #{linf_linear.1} parent=0 // pred_check_branch
    %16 = sbr.rel (0) target = $region17
  $region16: #{linf_linear.1} parent=0 // pred_region
    _
  $region17: #{linf_linear.1} parent=0 // pred_fallthru
    _
  %v17 = vld [vmem:[%s0] sm:$0xff]
  %v18 = vld [vmem:[%s0 + $0x8] sm:$0xff]
  %v19 = vld [vmem:[%s1] sm:$0xff]
  %v20 = vld [vmem:[%s1 + $0x8] sm:$0xff]
  %v21 = vld [vmem:[%s1 + $0x10] sm:$0xff]
  %v22 = vld [vmem:[%s1 + $0x18] sm:$0xff]
  %vm23 = vcmask 261120
  %v25 = vsel %vm23, %v17, 0
  %v28 = vsel %vm23, %v18, 0
  %30 = vmatpush.msra.mxu0 0.0
  %31 = vmatpush.msra.mxu0 0.0
  %32 = vmatpush.msra.mxu0 0.0
  %33 = vmatpush.msra.mxu0 0.0
  %34 = vmatpush.msra.mxu0 0.0
  %35 = vmatpush.msra.mxu0 0.0
  %36 = vmatpush.msra.mxu0 0.0
  %37 = vmatpush.msra.mxu0 0.0
  %38 = vmatpush.msra.mxu0 0.0
  %39 = vmatpush.msra.mxu0 0.0
  %40 = vmatpush.msra.mxu0 0.0
  %41 = vmatpush.msra.mxu0 0.0
  %42 = vmatpush.msra.mxu0 %v22
  %43 = vmatpush.msra.mxu0 %v21
  %44 = vmatpush.msra.mxu0 %v20
  %45 = vmatpush.msra.mxu0 %v19
  %46 = vmatmul.f32.gmra.mxu0 %v25
  %v47 = vpop.f32.mrf.mxu0
  %v48 = vadd.f32 0.0, %v47
  %49 = vmatmul.f32.gmra.mxu0 %v28
  %v50 = vpop.f32.mrf.mxu0
  %v51 = vadd.f32 0.0, %v50
  %52 = vdwg.mxu0
  %v53 = vld [vmem:[%s2] sm:$0x1]
  %v55 = vperm.slane %v53, 0
  %v57 = vmul.f32 %v48, %v55
  %v58 = vmul.f32 %v51, %v55
  %v59 = vld [vmem:[%s3] sm:$0x1]
  %v61 = vperm.slane %v59, 0
  %v63 = vadd.f32 %v57, %v61
  %v64 = vadd.f32 %v58, %v61
  %65 = vst [vmem:[%s4] sm:$0xff] %v63
  %66 = vst [vmem:[%s4 + $0x8] sm:$0xff] %v64
  // Predicated region
  $region18: #{linf_linear.1} parent=0 // pred_check
    _
  $region19: #{linf_linear.1} parent=0 // pred_check_branch
    %68 = sbr.rel (0) target = $region21
  $region20: #{linf_linear.1} parent=0 // pred_region
    _
  $region21: #{linf_linear.1} parent=0 // pred_fallthru
    _
  // Predicated region
  $region22: #{linf_linear.1} parent=0 // pred_check
    _
  $region23: #{linf_linear.1} parent=0 // pred_check_branch
    %70 = sbr.rel (0) target = $region25
  $region24: #{linf_linear.1} parent=0 // pred_region
    _
  $region25: #{linf_linear.1} parent=0 // pred_fallthru
    _

</llo_original>
